<compile_context>
chip_gen: v6e
topology: v6e:2x2x1
jax: 0.10.0
libtpu: 0.0.40
codegen_flags: <defaults>
</compile_context>

<pallas_src>
import math

import jax
import jax.numpy as jnp
from jax import lax
from jax.experimental import pallas as pl
from jax.experimental.pallas import tpu as pltpu

_EPS = 1e-12          # F.normalize default eps: x / max(||x||, eps)
_EPS2 = _EPS * _EPS   # compare against sum-of-squares (1e-24, still normal f32)


def _round_up(v: int, m: int) -> int:
    return ((v + m - 1) // m) * m


def _metric_kernel(x_ref, w_ref, inv_w_ref, o_ref):
    """Compute one (tm, tn) tile of row_normalize(x) @ row_normalize(w).T."""
    x = x_ref[...]          # (tm, F), native dtype
    w = w_ref[...]          # (tn, F), native dtype

    # Row sum-of-squares in f32; rsqrt runs on the EUP (VALU slots stay free).
    xf = x.astype(jnp.float32)
    inv_x = lax.rsqrt(
        jnp.maximum(jnp.sum(xf * xf, axis=-1, keepdims=True), _EPS2)
    )  # (tm, 1)

    # Raw inner products on the MXU, 'NT' form: contract the last dim of both
    # operands -> no explicit transpose is emitted.
    raw = lax.dot_general(
        x, w,
        dimension_numbers=(((1,), (1,)), ((), ())),
        preferred_element_type=jnp.float32,
    )  # (tm, tn), f32

    # Cheap post-matmul scaling: (tm,1) and (1,tn) broadcasts.
    o_ref[...] = (raw * inv_x * inv_w_ref[...]).astype(o_ref.dtype)


def metric_layer(x: jax.Array, weight: jax.Array,
                 *, tm: int = 128, tn: int = 128) -> jax.Array:
    """Cosine metric layer: F.linear(F.normalize(x, 1), F.normalize(w, 1))."""
    B, F_in = x.shape
    O, F_w = weight.shape
    assert F_in == F_w, "feature dims must match"
    F = F_in
    out_dtype = jnp.promote_types(x.dtype, weight.dtype)

    # Per-row weight scale. Static across forward calls for a fixed weight;
    # in a training loop this would be cached per weight update instead of
    # being recomputed inside the kernel for every batch tile.
    w32 = weight.astype(jnp.float32)
    inv_w = lax.rsqrt(jnp.maximum(jnp.sum(w32 * w32, axis=1), _EPS2))  # (O,)

    # Pad batch to a sublane multiple and n_out to a lane multiple (128) so
    # the output store is lane-dense (unmasked vst) and tiles are aligned.
    Bp = _round_up(B, 8)
    tm = min(tm, Bp)
    Bp = _round_up(Bp, tm)
    Op = _round_up(O, 128)
    tn = min(tn, Op)
    Op = _round_up(Op, tn)

    x_p = x if Bp == B else jnp.pad(x, ((0, Bp - B), (0, 0)))
    w_p = weight if Op == O else jnp.pad(weight, ((0, Op - O), (0, 0)))
    inv_w_p = (inv_w if Op == O else jnp.pad(inv_w, (0, Op - O))).reshape(1, Op)

    grid = (Bp // tm, Op // tn)

    cost = pl.CostEstimate(
        flops=2 * Bp * Op * F + 2 * Bp * F + 2 * Bp * Op,
        transcendentals=Bp,
        bytes_accessed=(x_p.size * x_p.dtype.itemsize
                        + w_p.size * w_p.dtype.itemsize
                        + inv_w_p.size * 4
                        + Bp * Op * jnp.dtype(out_dtype).itemsize),
    )

    # NOTE: the feature dim F is kept as the in-kernel contraction (it is also
    # needed whole for the row-norm). For very large F, add a third grid axis
    # marked "arbitrary" with an f32 VMEM accumulator.
    out_p = pl.pallas_call(
        _metric_kernel,
        out_shape=jax.ShapeDtypeStruct((Bp, Op), out_dtype),
        grid=grid,
        in_specs=[
            pl.BlockSpec((tm, F), lambda i, j: (i, 0)),   # x tile
            pl.BlockSpec((tn, F), lambda i, j: (j, 0)),   # weight tile
            pl.BlockSpec((1, tn), lambda i, j: (0, j)),   # inv_w tile
        ],
        out_specs=pl.BlockSpec((tm, tn), lambda i, j: (i, j)),
        compiler_params=pltpu.CompilerParams(
            dimension_semantics=("parallel", "parallel"),
        ),
        cost_estimate=cost,
    )(x_p, w_p, inv_w_p)

    return out_p[:B, :O]


def xavier_uniform(key, shape, gain=1.0, dtype=jnp.float32):
    """Matches torch.nn.init.xavier_uniform_ for a 2-D weight (out, in)."""
    fan_out, fan_in = shape
    bound = gain * math.sqrt(6.0 / (fan_in + fan_out))
    return jax.random.uniform(key, shape, dtype, minval=-bound, maxval=bound)


def metric_layer_ref(x, weight):
    """Pure-JAX reference (normalize-then-matmul order, like PyTorch)."""
    xn = x / jnp.maximum(jnp.linalg.norm(x, axis=1, keepdims=True), _EPS)
    wn = weight / jnp.maximum(jnp.linalg.norm(weight, axis=1, keepdims=True), _EPS)
    return xn @ wn.T


if __name__ == "__main__":
    key = jax.random.PRNGKey(0)
    k_x, k_w = jax.random.split(key)

    batch, n_in, n_out = 8, 32, 10

    x = jax.random.normal(k_x, (batch, n_in), dtype=jnp.float32)
    weight = xavier_uniform(k_w, (n_out, n_in), gain=1.0)

    out = jax.block_until_ready(metric_layer(x, weight))
    ref = metric_layer_ref(x, weight)

    assert out.shape == (batch, n_out)
    assert jnp.allclose(out, ref, atol=1e-5, rtol=1e-5), "mismatch vs reference"

    print("KERNEL_OK")
</pallas_src>

<mosaic_0001>
module attributes {stable_mosaic.version = 11 : i64} {
  func.func @_metric_kernel(%arg0: i32, %arg1: i32, %arg2: memref<8x32xf32, #tpu.memory_space<vmem>>, %arg3: memref<128x32xf32, #tpu.memory_space<vmem>>, %arg4: memref<1x128xf32, #tpu.memory_space<vmem>>, %arg5: memref<8x128xf32, #tpu.memory_space<vmem>>) attributes {dimension_semantics = [#tpu.dimension_semantics<parallel>, #tpu.dimension_semantics<parallel>], iteration_bounds = array<i64: 1, 1>, scalar_prefetch = 0 : i64, scratch_operands = 0 : i64, tpu.core_type = #tpu.core_type<tc>, window_params = [{transform_indices = @transform_0, window_bounds = array<i64: 8, 32>}, {transform_indices = @transform_1, window_bounds = array<i64: 128, 32>}, {transform_indices = @transform_2, window_bounds = array<i64: 1, 128>}, {transform_indices = @transform_3, window_bounds = array<i64: 8, 128>}]} {
    %c0 = arith.constant 0 : index
    %c0_0 = arith.constant 0 : index
    %0 = vector.load %arg2[%c0, %c0_0] : memref<8x32xf32, #tpu.memory_space<vmem>>, vector<8x32xf32>
    %c0_1 = arith.constant 0 : index
    %c0_2 = arith.constant 0 : index
    %1 = vector.load %arg3[%c0_1, %c0_2] : memref<128x32xf32, #tpu.memory_space<vmem>>, vector<128x32xf32>
    %2 = arith.mulf %0, %0 : vector<8x32xf32>
    %cst = arith.constant dense<0.000000e+00> : vector<8xf32>
    %3 = vector.multi_reduction <add>, %2, %cst [1] : vector<8x32xf32> to vector<8xf32>
    %4 = vector.shape_cast %3 : vector<8xf32> to vector<8x1xf32>
    %cst_3 = arith.constant 1.000000e-24 : f32
    %5 = vector.broadcast %cst_3 : f32 to vector<8x1xf32>
    %6 = arith.maximumf %4, %5 : vector<8x1xf32>
    %7 = math.rsqrt %6 : vector<8x1xf32>
    %cst_4 = arith.constant dense<0.000000e+00> : vector<8x128xf32>
    %8 = tpu.matmul %0, %1, %cst_4 {dimension_numbers = #tpu.dot_dimension_numbers<[1], [1], [0], [0], [0, 0, 1, 0], [], []>} : vector<8x32xf32>, vector<128x32xf32>, vector<8x128xf32> -> vector<8x128xf32>
    %9 = vector.broadcast %7 : vector<8x1xf32> to vector<8x128xf32>
    %10 = arith.mulf %8, %9 : vector<8x128xf32>
    %c0_5 = arith.constant 0 : index
    %c0_6 = arith.constant 0 : index
    %11 = vector.load %arg4[%c0_5, %c0_6] : memref<1x128xf32, #tpu.memory_space<vmem>>, vector<1x128xf32>
    %12 = vector.broadcast %11 : vector<1x128xf32> to vector<8x128xf32>
    %13 = arith.mulf %10, %12 : vector<8x128xf32>
    %c0_7 = arith.constant 0 : index
    %c0_8 = arith.constant 0 : index
    %14 = vector.load %arg5[%c0_7, %c0_8] : memref<8x128xf32, #tpu.memory_space<vmem>>, vector<8x128xf32>
    tpu.vector_store %arg5[%c0_7, %c0_8], %13 {strides = array<i32>} : memref<8x128xf32, #tpu.memory_space<vmem>>, vector<8x128xf32>,
    return
  }
  func.func @transform_0(%arg0: i32, %arg1: i32) -> (i32, i32) {
    %c0_i32 = arith.constant 0 : i32
    %c0_i32_0 = arith.constant 0 : i32
    return %arg0, %c0_i32 : i32, i32
  }
  func.func @transform_1(%arg0: i32, %arg1: i32) -> (i32, i32) {
    %c0_i32 = arith.constant 0 : i32
    %c0_i32_0 = arith.constant 0 : i32
    return %arg1, %c0_i32 : i32, i32
  }
  func.func @transform_2(%arg0: i32, %arg1: i32) -> (i32, i32) {
    %c0_i32 = arith.constant 0 : i32
    %c0_i32_0 = arith.constant 0 : i32
    return %c0_i32, %arg1 : i32, i32
  }
  func.func @transform_3(%arg0: i32, %arg1: i32) -> (i32, i32) {
    %c0_i32 = arith.constant 0 : i32
    return %arg0, %arg1 : i32, i32
  }
}

</mosaic_0001>

<llo_original>
// kernel: tpu_custom_call.1
$region0: #{tpu_custom_call.1}
  #allocation0 [shape = 'u32[]', space=smem, size = 0x4, offset = 0x4, fixed_abs, tag = 'smem constant byte address 0x4 - core index']
  #allocation1 [shape = 'u32[144,128]{1,0:T(1,128)}', space=vmem, size = 0x12000, scoped, tag = 'internal scratch']
  %s0 = inlined_call_operand.vmem [shape: f32[8,32], index: 0, kind: input, shape index: {}]
  %s1 = inlined_call_operand.vmem [shape: f32[128,32], index: 1, kind: input, shape index: {}]
  %s2 = inlined_call_operand.vmem [shape: f32[1,128], index: 2, kind: input, shape index: {}]
  %s3 = inlined_call_operand.hbm [shape: f32[8,128], index: 3, kind: output, shape index: {}]
  %s4 = sld [smem:[#allocation0]]
  $region22: #{tpu_custom_call.1} parent=0
    _
  %s6 = ssub.s32 1, %s4
  %s7 = scalar_select 0, %s6, %s4
  $region1: #{tpu_custom_call.1} parent=0
    #allocation2 [shape = 'u8[4096]{0}', space=vmem, size = 0x1000, scoped, tag = 'output window, operand 0, single buffered']
    #allocation3 [shape = 's32[1]{0}', space=sflag, size = 0x4, scoped, tag = 'scoped memory for tpu_custom_call.1']
    %8 = vsyncpa [#allocation3], 0
    // Predicated region
    $region2: #{tpu_custom_call.1} parent=1 // pred_check
      _
    $region3: #{tpu_custom_call.1} parent=1 // pred_check_branch
      %10 = sbr.rel (0) target = $region5
    $region4: #{tpu_custom_call.1} parent=1 // pred_region
      _
    $region5: #{tpu_custom_call.1} parent=1 // pred_fallthru
      _
    // Predicated region
    $region6: #{tpu_custom_call.1} parent=1 // pred_check
      _
    $region7: #{tpu_custom_call.1} parent=1 // pred_check_branch
      %12 = sbr.rel (0) target = $region9
    $region8: #{tpu_custom_call.1} parent=1 // pred_region
      _
    $region9: #{tpu_custom_call.1} parent=1 // pred_fallthru
      _
    // Predicated region
    $region10: #{tpu_custom_call.1} parent=1 // pred_check
      _
    $region11: #{tpu_custom_call.1} parent=1 // pred_check_branch
      %14 = sbr.rel (0) target = $region13
    $region12: #{tpu_custom_call.1} parent=1 // pred_region
      _
    $region13: #{tpu_custom_call.1} parent=1 // pred_fallthru
      _
    %v15 = vld [vmem:[%s0] sm:$0xff]
    %v16 = vld [vmem:[%s1] sm:$0xff]
    %v17 = vld [vmem:[%s1 + $0x8] sm:$0xff]
    %v18 = vld [vmem:[%s1 + $0x10] sm:$0xff]
    %v19 = vld [vmem:[%s1 + $0x18] sm:$0xff]
    %v20 = vld [vmem:[%s1 + $0x20] sm:$0xff]
    %v21 = vld [vmem:[%s1 + $0x28] sm:$0xff]
    %v22 = vld [vmem:[%s1 + $0x30] sm:$0xff]
    %v23 = vld [vmem:[%s1 + $0x38] sm:$0xff]
    %v24 = vld [vmem:[%s1 + $0x40] sm:$0xff]
    %v25 = vld [vmem:[%s1 + $0x48] sm:$0xff]
    %v26 = vld [vmem:[%s1 + $0x50] sm:$0xff]
    %v27 = vld [vmem:[%s1 + $0x58] sm:$0xff]
    %v28 = vld [vmem:[%s1 + $0x60] sm:$0xff]
    %v29 = vld [vmem:[%s1 + $0x68] sm:$0xff]
    %v30 = vld [vmem:[%s1 + $0x70] sm:$0xff]
    %v31 = vld [vmem:[%s1 + $0x78] sm:$0xff]
    %v32 = vmul.f32 %v15, %v15
    %vm33 = vcmask 261120
    %v34 = vsel %vm33, %v32, 0.0
    %35 = vadd.xlane.f32.xlu0 %v34
    %v36 = vpop.xlane.xlu0 %35
    %v37 = vmax.f32 %v36, 1e-24
    %v38 = vrsqrt.pop %v37
    %v40 = vsel %vm33, %v15, 0
    %v43 = vsel %vm33, %v16, 0
    %v46 = vsel %vm33, %v17, 0
    %v49 = vsel %vm33, %v18, 0
    %v52 = vsel %vm33, %v19, 0
    %v55 = vsel %vm33, %v20, 0
    %v58 = vsel %vm33, %v21, 0
    %v61 = vsel %vm33, %v22, 0
    %v64 = vsel %vm33, %v23, 0
    %v67 = vsel %vm33, %v24, 0
    %v70 = vsel %vm33, %v25, 0
    %v73 = vsel %vm33, %v26, 0
    %v76 = vsel %vm33, %v27, 0
    %v79 = vsel %vm33, %v28, 0
    %v82 = vsel %vm33, %v29, 0
    %v85 = vsel %vm33, %v30, 0
    %v88 = vsel %vm33, %v31, 0
    %90 = vmatprep.subr.mxu0 0.0
    %91 = vmatpush1.xpose.msra.mxu0 %v88
    %92 = vmatprep.subr.mxu0 0.0
    %93 = vmatpush1.xpose.msra.mxu0 %v85
    %94 = vmatprep.subr.mxu0 0.0
    %95 = vmatpush1.xpose.msra.mxu0 %v82
    %96 = vmatprep.subr.mxu0 0.0
    %97 = vmatpush1.xpose.msra.mxu0 %v79
    %98 = vmatprep.subr.mxu0 0.0
    %99 = vmatpush1.xpose.msra.mxu0 %v76
    %100 = vmatprep.subr.mxu0 0.0
    %101 = vmatpush1.xpose.msra.mxu0 %v73
    %102 = vmatprep.subr.mxu0 0.0
    %103 = vmatpush1.xpose.msra.mxu0 %v70
    %104 = vmatprep.subr.mxu0 0.0
    %105 = vmatpush1.xpose.msra.mxu0 %v67
    %106 = vmatprep.subr.mxu0 0.0
    %107 = vmatpush1.xpose.msra.mxu0 %v64
    %108 = vmatprep.subr.mxu0 0.0
    %109 = vmatpush1.xpose.msra.mxu0 %v61
    %110 = vmatprep.subr.mxu0 0.0
    %111 = vmatpush1.xpose.msra.mxu0 %v58
    %112 = vmatprep.subr.mxu0 0.0
    %113 = vmatpush1.xpose.msra.mxu0 %v55
    %114 = vmatprep.subr.mxu0 0.0
    %115 = vmatpush1.xpose.msra.mxu0 %v52
    %116 = vmatprep.subr.mxu0 0.0
    %117 = vmatpush1.xpose.msra.mxu0 %v49
    %118 = vmatprep.subr.mxu0 0.0
    %119 = vmatpush1.xpose.msra.mxu0 %v46
    %120 = vmatprep.subr.mxu0 0.0
    %121 = vmatpush1.xpose.msra.mxu0 %v43
    %122 = vmatprep.subr.mxu0 0.0
    %123 = vmatpush2.xpose.msra.mxu0 0.0
    %124 = vmatprep.subr.mxu0 0.0
    %125 = vmatpush2.xpose.msra.mxu0 0.0
    %126 = vmatprep.subr.mxu0 0.0
    %127 = vmatpush2.xpose.msra.mxu0 0.0
    %128 = vmatprep.subr.mxu0 0.0
    %129 = vmatpush2.xpose.msra.mxu0 0.0
    %130 = vmatprep.subr.mxu0 0.0
    %131 = vmatpush2.xpose.msra.mxu0 0.0
    %132 = vmatprep.subr.mxu0 0.0
    %133 = vmatpush2.xpose.msra.mxu0 0.0
    %134 = vmatprep.subr.mxu0 0.0
    %135 = vmatpush2.xpose.msra.mxu0 0.0
    %136 = vmatprep.subr.mxu0 0.0
    %137 = vmatpush2.xpose.msra.mxu0 0.0
    %138 = vmatprep.subr.mxu0 0.0
    %139 = vmatpush2.xpose.msra.mxu0 0.0
    %140 = vmatprep.subr.mxu0 0.0
    %141 = vmatpush2.xpose.msra.mxu0 0.0
    %142 = vmatprep.subr.mxu0 0.0
    %143 = vmatpush2.xpose.msra.mxu0 0.0
    %144 = vmatprep.subr.mxu0 0.0
    %145 = vmatpush2.xpose.msra.mxu0 0.0
    %146 = vmatprep.subr.mxu0 0.0
    %147 = vmatpush2.xpose.msra.mxu0 0.0
    %148 = vmatprep.subr.mxu0 0.0
    %149 = vmatpush2.xpose.msra.mxu0 0.0
    %150 = vmatprep.subr.mxu0 0.0
    %151 = vmatpush2.xpose.msra.mxu0 0.0
    %152 = vmatprep.subr.mxu0 0.0
    %153 = vmatpush2.xpose.msra.mxu0 0.0
    %154 = vmatprep.mubr.f32.mxu0 0.0
    %155 = vmatmul.mubr.f32.gmra.mxu0 %v40
    %v156 = vpop.f32.mrf.mxu0
    %v157 = vadd.f32 0.0, %v156
    %v158 = vpop.f32.mrf.mxu0
    %159 = vdwg.mxu0
    %v160 = vmul.f32 %v157, %v38
    %v161 = vld [vmem:[%s2] sm:$0x1]
    %v163 = vlaneseq
    %v164 = vshrl.u32 %v163, 7
    %v165 = vsub.s32 0, %v164
    %v166 = vrot.slane %v161, %v165
    %v168 = vmul.f32 %v160, %v166
    %169 = vst [vmem:[#allocation2] sm:$0xff] %v168
    // Predicated region
    $region14: #{tpu_custom_call.1} parent=1 // pred_check
      _
    $region15: #{tpu_custom_call.1} parent=1 // pred_check_branch
      %171 = sbr.rel (0) target = $region17
    $region16: #{tpu_custom_call.1} parent=1 // pred_region
      %s173 = ssub.s32 128, 128
      %174 = vsyncadd [#allocation3], %s173
      %s176 = sshll.u32 [#allocation2], 4
      %s177 = int_to_ptr.vmem [resolvable:$true] %s176
      %179 = dma.vmem_to_hbm [thread:$0]  %s177, 128, %s3, [#allocation3]
    $region17: #{tpu_custom_call.1} parent=1 // pred_fallthru
      _
    // Predicated region
    $region18: #{tpu_custom_call.1} parent=1 // pred_check
      _
    $region19: #{tpu_custom_call.1} parent=1 // pred_check_branch
      %181 = sbr.rel (0) target = $region21
    $region20: #{tpu_custom_call.1} parent=1 // pred_region
      %182 = dma.done [#allocation3], 128
    $region21: #{tpu_custom_call.1} parent=1 // pred_fallthru
      _
    %183 = vsyncpa [#allocation3], 1

</llo_original>
